<compile_context>
chip_gen: v5e
topology: v5e:2x2
jax: 0.10.0
libtpu: 0.0.40
codegen_flags: <defaults>
</compile_context>

<pallas_src>
import functools

import jax
import jax.numpy as jnp
from jax.experimental import pallas as pl
from jax.experimental.pallas import tpu as pltpu

LANE = 128      # lane width (last-dim vreg width)
SUBLANE = 16    # bf16 sublane packing; batch tiles are multiples of this


def _round_up(n: int, m: int) -> int:
    return (n + m - 1) // m * m


def _physical_vmem_bytes() -> int:
    try:
        return int(pltpu.get_tpu_info().vmem_capacity_bytes)
    except Exception:
        return 64 << 20  # conservative (v7x per-TC VMEM); v5e/v6e have 128 MiB


def make_mlp_kernel(relu_flags):
    """Fused MLP kernel for one batch tile.

    relu_flags[i] == True  -> ReLU after linear i (hidden layers)
    relu_flags[i] == False -> linear output (last layer)
    """
    n_linear = len(relu_flags)

    def kernel(*refs):
        x_ref = refs[0]
        y_ref = refs[-1]
        h = x_ref[...]                                    # (TB, Din_p) bf16
        for li in range(n_linear):
            w = refs[1 + 2 * li][...]                     # (Din_p, Dout_p) bf16
            b = refs[2 + 2 * li][...]                     # (1, Dout_p)     f32
            # bf16 MXU inputs, f32 accumulation; bias add / ReLU stay in f32.
            a = jnp.dot(h, w, preferred_element_type=jnp.float32) + b
            if relu_flags[li]:
                a = jnp.maximum(a, 0.0)
            # Re-cast to bf16 once per layer for the next matmul input.
            h = a.astype(jnp.bfloat16) if li < n_linear - 1 else a
        y_ref[...] = h.astype(y_ref.dtype)                # full-width lane-dense store

    return kernel


def _pallas_mlp_block(x_p, layer_params, relu_flags, out_dtype, tb):
    """One pallas_call running `layer_params` fused over a batch-tiled grid.

    x_p: (Bp, Din_p) bf16, Bp % tb == 0, Din_p % 128 == 0.
    layer_params: list of (w_p (Din_p_i, Dout_p_i) bf16, b_p (1, Dout_p_i) f32).
    """
    Bp, din_p = x_p.shape
    dout_p = layer_params[-1][0].shape[1]
    grid = Bp // tb

    args = [x_p]
    in_specs = [pl.BlockSpec((tb, din_p), lambda i: (i, 0))]
    weight_bytes = 0
    flops = 0
    max_feat = max(din_p, dout_p)
    for (w_p, b_p) in layer_params:
        di, do = w_p.shape
        max_feat = max(max_feat, do)
        args += [w_p, b_p]
        # Constant index_map -> resident across the grid; Buffered(1) -> single buffer
        # (default double-buffering would needlessly hold 2x the weight bytes in VMEM).
        in_specs += [
            pl.BlockSpec((di, do), lambda i: (0, 0), pipeline_mode=pl.Buffered(1)),
            pl.BlockSpec((1, do), lambda i: (0, 0), pipeline_mode=pl.Buffered(1)),
        ]
        weight_bytes += w_p.size * 2 + b_p.size * 4
        flops += 2 * Bp * di * do

    out_spec = pl.BlockSpec((tb, dout_p), lambda i: (i, 0))
    out_itemsize = jnp.dtype(out_dtype).itemsize

    # VMEM footprint: weights x1 (single buffered) + x/y tiles x2 (pipeline
    # double-buffering) + headroom for the in-flight f32 activation tile.
    io_bytes = 2 * tb * din_p * x_p.dtype.itemsize + 2 * tb * dout_p * out_itemsize
    act_bytes = 2 * tb * max_feat * 4
    physical = _physical_vmem_bytes()
    vmem_limit = int(min(max(weight_bytes + io_bytes + act_bytes + (4 << 20), 32 << 20),
                         physical - (8 << 20)))

    cost = pl.CostEstimate(
        flops=flops,
        transcendentals=0,
        bytes_accessed=weight_bytes + Bp * din_p * x_p.dtype.itemsize
        + Bp * dout_p * out_itemsize,
    )

    # grid==1: "arbitrary" (no gain from megacore; avoids duplicating the constant
    # weight DMA on both v7x cores).  grid>1: shard the batch axis across cores.
    semantics = ("parallel",) if grid > 1 else ("arbitrary",)

    return pl.pallas_call(
        make_mlp_kernel(relu_flags),
        out_shape=jax.ShapeDtypeStruct((Bp, dout_p), out_dtype),
        grid_spec=pltpu.PrefetchScalarGridSpec(
            num_scalar_prefetch=0,
            grid=(grid,),
            in_specs=in_specs,
            out_specs=out_spec,
        ),
        compiler_params=pltpu.CompilerParams(
            dimension_semantics=semantics,
            vmem_limit_bytes=vmem_limit,
        ),
        cost_estimate=cost,
    )(*args)


@functools.partial(jax.jit, static_argnames=("out_features", "tb"))
def mlp_forward(x, padded_weights, padded_biases, *, out_features, tb=None):
    """x: (B, Cin) f32/bf16.  padded_weights/biases: output of prepare_params()."""
    B, Cin = x.shape
    n_linear = len(padded_weights)
    din_p = padded_weights[0].shape[0]

    # --- batch-tile policy --------------------------------------------------
    # Small B: one full-width grid step (avoid paying ~0.35us/step for tiny tiles).
    # Large B: 256-row tiles -> fills the 256x256 MXU M dim (v6e/v7x), multiple of
    # 128 for v5e, and gives a multi-step "parallel" grid for v7x's two TCs.
    if tb is None:
        tb = _round_up(B, SUBLANE) if B <= 256 else 256
    tb = max(SUBLANE, _round_up(tb, SUBLANE))
    Bp = _round_up(B, tb)

    # x padding is per-call (batch is runtime data); weights were padded once already.
    x_p = jnp.pad(x.astype(jnp.bfloat16), ((0, Bp - B), (0, din_p - Cin)))

    layer_params = list(zip(padded_weights, padded_biases))
    resident_bytes = sum(w.size * 2 + b.size * 4 for w, b in layer_params)

    # Gate the fully-fused path on the resident-weight footprint vs physical VMEM
    # (48 MiB of bf16 weights fits v5e/v6e but not v7x's 64 MiB).
    fused_budget = int(_physical_vmem_bytes() * 0.6)

    if resident_bytes <= fused_budget:
        relu_flags = tuple(li < n_linear - 1 for li in range(n_linear))
        y_p = _pallas_mlp_block(x_p, layer_params, relu_flags, jnp.float32, tb)
    else:
        # Fallback: per-layer pallas_calls (same kernel, one linear each); keeps every
        # call within the VMEM budget.  Intermediates round-trip HBM in bf16.
        h = x_p
        for li, (w_p, b_p) in enumerate(layer_params):
            last = li == n_linear - 1
            h = _pallas_mlp_block(
                h, [(w_p, b_p)], (not last,),
                jnp.float32 if last else jnp.bfloat16, tb)
        y_p = h

    # Slice back to true batch / output width (padded rows/cols are discarded).
    return y_p[:B, :out_features]


def init_params(key, in_channels, out_channels, n_layers, hidden_size):
    """PyTorch nn.Linear-style init; weights stored as [in, out] in f32."""
    assert n_layers >= 3
    sizes = [in_channels] + [hidden_size] * (n_layers - 1) + [out_channels]
    ks = jax.random.split(key, 2 * (len(sizes) - 1))
    weights, biases = [], []
    for i in range(len(sizes) - 1):
        fan_in, fan_out = sizes[i], sizes[i + 1]
        bound = fan_in ** -0.5
        w = jax.random.uniform(ks[2 * i], (fan_in, fan_out), jnp.float32, -bound, bound)
        b = jax.random.uniform(ks[2 * i + 1], (fan_out,), jnp.float32, -bound, bound)
        weights.append(w)
        biases.append(b)
    return weights, biases


def prepare_params(weights, biases, in_channels):
    """One-time host-side prep: lane-pad every feature dim to a multiple of 128 and
    store weights in bf16 (MXU rate + half the weight DMA).  Done once, outside jit."""
    dims = [in_channels] + [int(w.shape[1]) for w in weights]
    dims_p = [_round_up(max(d, 1), LANE) for d in dims]
    pw, pb = [], []
    for li, (w, b) in enumerate(zip(weights, biases)):
        di, do = dims_p[li], dims_p[li + 1]
        w_p = jnp.pad(jnp.asarray(w, jnp.bfloat16),
                      ((0, di - w.shape[0]), (0, do - w.shape[1])))
        b_p = jnp.pad(jnp.asarray(b, jnp.float32).reshape(1, -1),
                      ((0, 0), (0, do - b.shape[0])))
        pw.append(w_p)
        pb.append(b_p)
    return pw, pb


def mlp_reference(x, weights, biases):
    """Pure-JAX reference mirroring the kernel's numerics (bf16 matmul, f32 acc,
    f32 bias+ReLU, bf16 inter-layer activations)."""
    n = len(weights)
    h = x.astype(jnp.bfloat16)
    for i, (w, b) in enumerate(zip(weights, biases)):
        a = jnp.dot(h, w.astype(jnp.bfloat16),
                    preferred_element_type=jnp.float32) + b.reshape(1, -1)
        if i < n - 1:
            h = jnp.maximum(a, 0.0).astype(jnp.bfloat16)
        else:
            h = a
    return h


if __name__ == "__main__":
    B = 64              # batch
    IN_CHANNELS = 16
    OUT_CHANNELS = 8
    HIDDEN = 32         # module default hidden_size
    N_LAYERS = 4        # >= 3 per the module's assert  -> 4 Linear layers

    key = jax.random.PRNGKey(0)
    kx, kp = jax.random.split(key)
    x = jax.random.normal(kx, (B, IN_CHANNELS), dtype=jnp.float32)

    weights, biases = init_params(kp, IN_CHANNELS, OUT_CHANNELS, N_LAYERS, HIDDEN)
    padded_w, padded_b = prepare_params(weights, biases, IN_CHANNELS)  # one-time prep

    y = mlp_forward(x, padded_w, padded_b, out_features=OUT_CHANNELS)  # single 64-row tile
    y = jax.block_until_ready(y)

    y_ref = mlp_reference(x, weights, biases)
    assert y.shape == (B, OUT_CHANNELS)
    assert jnp.allclose(y, y_ref, atol=2e-2, rtol=2e-2), "mismatch vs reference"

    print("KERNEL_OK")
</pallas_src>

<mosaic_0001>
module attributes {stable_mosaic.version = 11 : i64} {
  func.func @kernel(%arg0: i32, %arg1: memref<64x128xbf16, #tpu.memory_space<vmem>>, %arg2: memref<128x128xbf16, #tpu.memory_space<vmem>>, %arg3: memref<1x128xf32, #tpu.memory_space<vmem>>, %arg4: memref<128x128xbf16, #tpu.memory_space<vmem>>, %arg5: memref<1x128xf32, #tpu.memory_space<vmem>>, %arg6: memref<128x128xbf16, #tpu.memory_space<vmem>>, %arg7: memref<1x128xf32, #tpu.memory_space<vmem>>, %arg8: memref<128x128xbf16, #tpu.memory_space<vmem>>, %arg9: memref<1x128xf32, #tpu.memory_space<vmem>>, %arg10: memref<64x128xf32, #tpu.memory_space<vmem>>) attributes {dimension_semantics = [#tpu.dimension_semantics<arbitrary>], iteration_bounds = array<i64: 1>, scalar_prefetch = 0 : i64, scratch_operands = 0 : i64, tpu.core_type = #tpu.core_type<tc>, window_params = [{transform_indices = @transform_0, window_bounds = array<i64: 64, 128>}, {pipeline_mode = #tpu.pipeline_mode<synchronous>, transform_indices = @transform_1, window_bounds = array<i64: 128, 128>}, {pipeline_mode = #tpu.pipeline_mode<synchronous>, transform_indices = @transform_2, window_bounds = array<i64: 1, 128>}, {pipeline_mode = #tpu.pipeline_mode<synchronous>, transform_indices = @transform_3, window_bounds = array<i64: 128, 128>}, {pipeline_mode = #tpu.pipeline_mode<synchronous>, transform_indices = @transform_4, window_bounds = array<i64: 1, 128>}, {pipeline_mode = #tpu.pipeline_mode<synchronous>, transform_indices = @transform_5, window_bounds = array<i64: 128, 128>}, {pipeline_mode = #tpu.pipeline_mode<synchronous>, transform_indices = @transform_6, window_bounds = array<i64: 1, 128>}, {pipeline_mode = #tpu.pipeline_mode<synchronous>, transform_indices = @transform_7, window_bounds = array<i64: 128, 128>}, {pipeline_mode = #tpu.pipeline_mode<synchronous>, transform_indices = @transform_8, window_bounds = array<i64: 1, 128>}, {transform_indices = @transform_9, window_bounds = array<i64: 64, 128>}]} {
    %c0 = arith.constant 0 : index
    %c0_0 = arith.constant 0 : index
    %0 = vector.load %arg1[%c0, %c0_0] : memref<64x128xbf16, #tpu.memory_space<vmem>>, vector<64x128xbf16>
    %c0_1 = arith.constant 0 : index
    %c0_2 = arith.constant 0 : index
    %1 = vector.load %arg2[%c0_1, %c0_2] : memref<128x128xbf16, #tpu.memory_space<vmem>>, vector<128x128xbf16>
    %c0_3 = arith.constant 0 : index
    %c0_4 = arith.constant 0 : index
    %2 = vector.load %arg3[%c0_3, %c0_4] : memref<1x128xf32, #tpu.memory_space<vmem>>, vector<1x128xf32>
    %cst = arith.constant dense<0.000000e+00> : vector<64x128xf32>
    %3 = tpu.matmul %0, %1, %cst {dimension_numbers = #tpu.dot_dimension_numbers<[1], [0], [0], [1], [0, 0, 1, 1], [], []>} : vector<64x128xbf16>, vector<128x128xbf16>, vector<64x128xf32> -> vector<64x128xf32>
    %4 = vector.broadcast %2 : vector<1x128xf32> to vector<64x128xf32>
    %5 = arith.addf %3, %4 : vector<64x128xf32>
    %cst_5 = arith.constant 0.000000e+00 : f32
    %6 = vector.broadcast %cst_5 : f32 to vector<64x128xf32>
    %7 = arith.maximumf %5, %6 : vector<64x128xf32>
    %8 = arith.truncf %7 : vector<64x128xf32> to vector<64x128xbf16>
    %c0_6 = arith.constant 0 : index
    %c0_7 = arith.constant 0 : index
    %9 = vector.load %arg4[%c0_6, %c0_7] : memref<128x128xbf16, #tpu.memory_space<vmem>>, vector<128x128xbf16>
    %c0_8 = arith.constant 0 : index
    %c0_9 = arith.constant 0 : index
    %10 = vector.load %arg5[%c0_8, %c0_9] : memref<1x128xf32, #tpu.memory_space<vmem>>, vector<1x128xf32>
    %cst_10 = arith.constant dense<0.000000e+00> : vector<64x128xf32>
    %11 = tpu.matmul %8, %9, %cst_10 {dimension_numbers = #tpu.dot_dimension_numbers<[1], [0], [0], [1], [0, 0, 1, 1], [], []>} : vector<64x128xbf16>, vector<128x128xbf16>, vector<64x128xf32> -> vector<64x128xf32>
    %12 = vector.broadcast %10 : vector<1x128xf32> to vector<64x128xf32>
    %13 = arith.addf %11, %12 : vector<64x128xf32>
    %cst_11 = arith.constant 0.000000e+00 : f32
    %14 = vector.broadcast %cst_11 : f32 to vector<64x128xf32>
    %15 = arith.maximumf %13, %14 : vector<64x128xf32>
    %16 = arith.truncf %15 : vector<64x128xf32> to vector<64x128xbf16>
    %c0_12 = arith.constant 0 : index
    %c0_13 = arith.constant 0 : index
    %17 = vector.load %arg6[%c0_12, %c0_13] : memref<128x128xbf16, #tpu.memory_space<vmem>>, vector<128x128xbf16>
    %c0_14 = arith.constant 0 : index
    %c0_15 = arith.constant 0 : index
    %18 = vector.load %arg7[%c0_14, %c0_15] : memref<1x128xf32, #tpu.memory_space<vmem>>, vector<1x128xf32>
    %cst_16 = arith.constant dense<0.000000e+00> : vector<64x128xf32>
    %19 = tpu.matmul %16, %17, %cst_16 {dimension_numbers = #tpu.dot_dimension_numbers<[1], [0], [0], [1], [0, 0, 1, 1], [], []>} : vector<64x128xbf16>, vector<128x128xbf16>, vector<64x128xf32> -> vector<64x128xf32>
    %20 = vector.broadcast %18 : vector<1x128xf32> to vector<64x128xf32>
    %21 = arith.addf %19, %20 : vector<64x128xf32>
    %cst_17 = arith.constant 0.000000e+00 : f32
    %22 = vector.broadcast %cst_17 : f32 to vector<64x128xf32>
    %23 = arith.maximumf %21, %22 : vector<64x128xf32>
    %24 = arith.truncf %23 : vector<64x128xf32> to vector<64x128xbf16>
    %c0_18 = arith.constant 0 : index
    %c0_19 = arith.constant 0 : index
    %25 = vector.load %arg8[%c0_18, %c0_19] : memref<128x128xbf16, #tpu.memory_space<vmem>>, vector<128x128xbf16>
    %c0_20 = arith.constant 0 : index
    %c0_21 = arith.constant 0 : index
    %26 = vector.load %arg9[%c0_20, %c0_21] : memref<1x128xf32, #tpu.memory_space<vmem>>, vector<1x128xf32>
    %cst_22 = arith.constant dense<0.000000e+00> : vector<64x128xf32>
    %27 = tpu.matmul %24, %25, %cst_22 {dimension_numbers = #tpu.dot_dimension_numbers<[1], [0], [0], [1], [0, 0, 1, 1], [], []>} : vector<64x128xbf16>, vector<128x128xbf16>, vector<64x128xf32> -> vector<64x128xf32>
    %28 = vector.broadcast %26 : vector<1x128xf32> to vector<64x128xf32>
    %29 = arith.addf %27, %28 : vector<64x128xf32>
    %c0_23 = arith.constant 0 : index
    %c0_24 = arith.constant 0 : index
    %30 = vector.load %arg10[%c0_23, %c0_24] : memref<64x128xf32, #tpu.memory_space<vmem>>, vector<64x128xf32>
    tpu.vector_store %arg10[%c0_23, %c0_24], %29 {strides = array<i32>} : memref<64x128xf32, #tpu.memory_space<vmem>>, vector<64x128xf32>,
    return
  }
  func.func @transform_0(%arg0: i32) -> (i32, i32) {
    %c0_i32 = arith.constant 0 : i32
    %c0_i32_0 = arith.constant 0 : i32
    return %arg0, %c0_i32 : i32, i32
  }
  func.func @transform_1(%arg0: i32) -> (i32, i32) {
    %c0_i32 = arith.constant 0 : i32
    %c0_i32_0 = arith.constant 0 : i32
    %c0_i32_1 = arith.constant 0 : i32
    return %c0_i32, %c0_i32_0 : i32, i32
  }
  func.func @transform_2(%arg0: i32) -> (i32, i32) {
    %c0_i32 = arith.constant 0 : i32
    %c0_i32_0 = arith.constant 0 : i32
    %c0_i32_1 = arith.constant 0 : i32
    return %c0_i32, %c0_i32_0 : i32, i32
  }
  func.func @transform_3(%arg0: i32) -> (i32, i32) {
    %c0_i32 = arith.constant 0 : i32
    %c0_i32_0 = arith.constant 0 : i32
    %c0_i32_1 = arith.constant 0 : i32
    return %c0_i32, %c0_i32_0 : i32, i32
  }
  func.func @transform_4(%arg0: i32) -> (i32, i32) {
    %c0_i32 = arith.constant 0 : i32
    %c0_i32_0 = arith.constant 0 : i32
    %c0_i32_1 = arith.constant 0 : i32
    return %c0_i32, %c0_i32_0 : i32, i32
  }
  func.func @transform_5(%arg0: i32) -> (i32, i32) {
    %c0_i32 = arith.constant 0 : i32
    %c0_i32_0 = arith.constant 0 : i32
    %c0_i32_1 = arith.constant 0 : i32
    return %c0_i32, %c0_i32_0 : i32, i32
  }
  func.func @transform_6(%arg0: i32) -> (i32, i32) {
    %c0_i32 = arith.constant 0 : i32
    %c0_i32_0 = arith.constant 0 : i32
    %c0_i32_1 = arith.constant 0 : i32
    return %c0_i32, %c0_i32_0 : i32, i32
  }
  func.func @transform_7(%arg0: i32) -> (i32, i32) {
    %c0_i32 = arith.constant 0 : i32
    %c0_i32_0 = arith.constant 0 : i32
    %c0_i32_1 = arith.constant 0 : i32
    return %c0_i32, %c0_i32_0 : i32, i32
  }
  func.func @transform_8(%arg0: i32) -> (i32, i32) {
    %c0_i32 = arith.constant 0 : i32
    %c0_i32_0 = arith.constant 0 : i32
    %c0_i32_1 = arith.constant 0 : i32
    return %c0_i32, %c0_i32_0 : i32, i32
  }
  func.func @transform_9(%arg0: i32) -> (i32, i32) {
    %c0_i32 = arith.constant 0 : i32
    %c0_i32_0 = arith.constant 0 : i32
    return %arg0, %c0_i32 : i32, i32
  }
}

</mosaic_0001>

<llo_original>
// kernel: mlp_forward.1
$region0: #{mlp_forward.1}
  #allocation0 [shape = 'u32[]', space=smem, size = 0x4, offset = 0x4, fixed_abs, tag = 'smem constant byte address 0x4 - core index']
  #allocation1 [shape = 'u32[72,128]{1,0:T(1,128)}', space=vmem, size = 0x9000, scoped, tag = 'internal scratch']
  %s0 = inlined_call_operand.vmem [shape: bf16[64,128], index: 0, kind: input, shape index: {}]
  %s1 = inlined_call_operand.vmem [shape: bf16[128,128], index: 1, kind: input, shape index: {}]
  %s2 = inlined_call_operand.vmem [shape: f32[1,128], index: 2, kind: input, shape index: {}]
  %s3 = inlined_call_operand.vmem [shape: bf16[128,128], index: 3, kind: input, shape index: {}]
  %s4 = inlined_call_operand.vmem [shape: f32[1,128], index: 4, kind: input, shape index: {}]
  %s5 = inlined_call_operand.hbm [shape: bf16[128,128], index: 5, kind: input, shape index: {}]
  %s6 = inlined_call_operand.vmem [shape: f32[1,128], index: 6, kind: input, shape index: {}]
  %s7 = inlined_call_operand.hbm [shape: bf16[128,128], index: 7, kind: input, shape index: {}]
  %s8 = inlined_call_operand.vmem [shape: f32[1,128], index: 8, kind: input, shape index: {}]
  %s9 = inlined_call_operand.vmem [shape: f32[64,128], index: 9, kind: output, shape index: {}]
  %s10 = sld [smem:[#allocation0]]
  $region54: #{mlp_forward.1} parent=0
    _
  %s12 = ssub.s32 1, %s10
  %s13 = scalar_select 0, %s12, %s10
  $region1: #{mlp_forward.1} parent=0
    #allocation2 [shape = 'u8[32768]{0}', space=vmem, size = 0x8000, scoped, tag = 'input window, operand 5, single buffered']
    #allocation3 [shape = 's32[1]{0}', space=sflag, size = 0x4, scoped, tag = 'scoped memory for mlp_forward.1']
    #allocation4 [shape = 'u8[32768]{0}', space=vmem, size = 0x8000, scoped, tag = 'input window, operand 7, single buffered']
    #allocation5 [shape = 's32[1]{0}', space=sflag, size = 0x4, scoped, tag = 'scoped memory for mlp_forward.1']
    %14 = vsyncpa [#allocation3], 0
    %15 = vsyncpa [#allocation5], 0
    // Predicated region
    $region2: #{mlp_forward.1} parent=1 // pred_check
      _
    $region3: #{mlp_forward.1} parent=1 // pred_check_branch
      %17 = sbr.rel (0) target = $region5
    $region4: #{mlp_forward.1} parent=1 // pred_region
      _
    $region5: #{mlp_forward.1} parent=1 // pred_fallthru
      _
    // Predicated region
    $region6: #{mlp_forward.1} parent=1 // pred_check
      _
    $region7: #{mlp_forward.1} parent=1 // pred_check_branch
      %19 = sbr.rel (0) target = $region9
    $region8: #{mlp_forward.1} parent=1 // pred_region
      _
    $region9: #{mlp_forward.1} parent=1 // pred_fallthru
      _
    // Predicated region
    $region10: #{mlp_forward.1} parent=1 // pred_check
      _
    $region11: #{mlp_forward.1} parent=1 // pred_check_branch
      %21 = sbr.rel (0) target = $region13
    $region12: #{mlp_forward.1} parent=1 // pred_region
      _
    $region13: #{mlp_forward.1} parent=1 // pred_fallthru
      _
    // Predicated region
    $region14: #{mlp_forward.1} parent=1 // pred_check
      _
    $region15: #{mlp_forward.1} parent=1 // pred_check_branch
      %23 = sbr.rel (0) target = $region17
    $region16: #{mlp_forward.1} parent=1 // pred_region
      _
    $region17: #{mlp_forward.1} parent=1 // pred_fallthru
      _
    // Predicated region
    $region18: #{mlp_forward.1} parent=1 // pred_check
      _
    $region19: #{mlp_forward.1} parent=1 // pred_check_branch
      %25 = sbr.rel (0) target = $region21
    $region20: #{mlp_forward.1} parent=1 // pred_region
      _
    $region21: #{mlp_forward.1} parent=1 // pred_fallthru
      _
    // Predicated region
    $region22: #{mlp_forward.1} parent=1 // pred_check
      _
    $region23: #{mlp_forward.1} parent=1 // pred_check_branch
      %27 = sbr.rel (0) target = $region25
    $region24: #{mlp_forward.1} parent=1 // pred_region
      %29 = vsyncadd [#allocation3], 0
      %s30 = sshll.u32 %s5, 4
      %s31 = int_to_ptr.hbm [resolvable:$true] %s30
      %s32 = sshll.u32 [#allocation2], 4
      %s33 = int_to_ptr.vmem [resolvable:$true] %s32
      %38 = dma.hbm_to_vmem [thread:$0]  %s31, 1024, %s33, [#allocation3], 64, 64, 4
    $region25: #{mlp_forward.1} parent=1 // pred_fallthru
      _
    // Predicated region
    $region26: #{mlp_forward.1} parent=1 // pred_check
      _
    $region27: #{mlp_forward.1} parent=1 // pred_check_branch
      %40 = sbr.rel (0) target = $region29
    $region28: #{mlp_forward.1} parent=1 // pred_region
      _
    $region29: #{mlp_forward.1} parent=1 // pred_fallthru
      _
    // Predicated region
    $region30: #{mlp_forward.1} parent=1 // pred_check
      _
    $region31: #{mlp_forward.1} parent=1 // pred_check_branch
      %42 = sbr.rel (0) target = $region33
    $region32: #{mlp_forward.1} parent=1 // pred_region
      %44 = vsyncadd [#allocation5], 0
      %s45 = sshll.u32 %s7, 4
      %s46 = int_to_ptr.hbm [resolvable:$true] %s45
      %s47 = sshll.u32 [#allocation4], 4
      %s48 = int_to_ptr.vmem [resolvable:$true] %s47
      %53 = dma.hbm_to_vmem [thread:$0]  %s46, 1024, %s48, [#allocation5], 64, 64, 4
    $region33: #{mlp_forward.1} parent=1 // pred_fallthru
      _
    // Predicated region
    $region34: #{mlp_forward.1} parent=1 // pred_check
      _
    $region35: #{mlp_forward.1} parent=1 // pred_check_branch
      %55 = sbr.rel (0) target = $region37
    $region36: #{mlp_forward.1} parent=1 // pred_region
      _
    $region37: #{mlp_forward.1} parent=1 // pred_fallthru
      _
    // Predicated region
    $region38: #{mlp_forward.1} parent=1 // pred_check
      _
    $region39: #{mlp_forward.1} parent=1 // pred_check_branch
      %57 = sbr.rel (0) target = $region41
    $region40: #{mlp_forward.1} parent=1 // pred_region
      %59 = dma.done [#allocation3], 1024
    $region41: #{mlp_forward.1} parent=1 // pred_fallthru
      _
    // Predicated region
    $region42: #{mlp_forward.1} parent=1 // pred_check
      _
    $region43: #{mlp_forward.1} parent=1 // pred_check_branch
      %61 = sbr.rel (0) target = $region45
    $region44: #{mlp_forward.1} parent=1 // pred_region
      %63 = dma.done [#allocation5], 1024
    $region45: #{mlp_forward.1} parent=1 // pred_fallthru
      _
    %v64 = vld [vmem:[%s0] sm:$0xf]
    %v65 = vld [vmem:[%s0 + $0x4] sm:$0xf]
    %v66 = vld [vmem:[%s0 + $0x8] sm:$0xf]
    %v67 = vld [vmem:[%s0 + $0xc] sm:$0xf]
    %v68 = vld [vmem:[%s0 + $0x10] sm:$0xf]
    %v69 = vld [vmem:[%s0 + $0x14] sm:$0xf]
    %v70 = vld [vmem:[%s0 + $0x18] sm:$0xf]
    %v71 = vld [vmem:[%s0 + $0x1c] sm:$0xf]
    %v72 = vld [vmem:[%s1] sm:$0xf]
    %v73 = vld [vmem:[%s1 + $0x4] sm:$0xf]
    %v74 = vld [vmem:[%s1 + $0x8] sm:$0xf]
    %v75 = vld [vmem:[%s1 + $0xc] sm:$0xf]
    %v76 = vld [vmem:[%s1 + $0x10] sm:$0xf]
    %v77 = vld [vmem:[%s1 + $0x14] sm:$0xf]
    %v78 = vld [vmem:[%s1 + $0x18] sm:$0xf]
    %v79 = vld [vmem:[%s1 + $0x1c] sm:$0xf]
    %v80 = vld [vmem:[%s1 + $0x20] sm:$0xf]
    %v81 = vld [vmem:[%s1 + $0x24] sm:$0xf]
    %v82 = vld [vmem:[%s1 + $0x28] sm:$0xf]
    %v83 = vld [vmem:[%s1 + $0x2c] sm:$0xf]
    %v84 = vld [vmem:[%s1 + $0x30] sm:$0xf]
    %v85 = vld [vmem:[%s1 + $0x34] sm:$0xf]
    %v86 = vld [vmem:[%s1 + $0x38] sm:$0xf]
    %v87 = vld [vmem:[%s1 + $0x3c] sm:$0xf]
    %v88 = vld [vmem:[%s2] sm:$0x1]
    %v90 = vperm.slane %v88, 0
    %v100 = vunpack.c.l.b16 %v64
    %v101 = vunpack.c.l.b16 %v65
    %v102 = vunpack.c.l.b16 %v66
    %v103 = vunpack.c.l.b16 %v67
    %v104 = vunpack.c.l.b16 %v68
    %v105 = vunpack.c.l.b16 %v69
    %v106 = vunpack.c.l.b16 %v70
    %v107 = vunpack.c.l.b16 %v71
    %v108 = vpack.c.b16 %v101, %v100
    %v109 = vpack.c.b16 %v103, %v102
    %v110 = vpack.c.b16 %v105, %v104
    %v111 = vpack.c.b16 %v107, %v106
    %v132 = vunpack.c.l.b16 %v72
    %v133 = vunpack.c.l.b16 %v73
    %v134 = vunpack.c.l.b16 %v74
    %v135 = vunpack.c.l.b16 %v75
    %v136 = vunpack.c.l.b16 %v76
    %v137 = vunpack.c.l.b16 %v77
    %v138 = vunpack.c.l.b16 %v78
    %v139 = vunpack.c.l.b16 %v79
    %v140 = vunpack.c.l.b16 %v80
    %v141 = vunpack.c.l.b16 %v81
    %v142 = vunpack.c.l.b16 %v82
    %v143 = vunpack.c.l.b16 %v83
    %v144 = vunpack.c.l.b16 %v84
    %v145 = vunpack.c.l.b16 %v85
    %v146 = vunpack.c.l.b16 %v86
    %v147 = vunpack.c.l.b16 %v87
    %v148 = vpack.c.b16 %v133, %v132
    %v149 = vpack.c.b16 %v135, %v134
    %v150 = vpack.c.b16 %v137, %v136
    %v151 = vpack.c.b16 %v139, %v138
    %v152 = vpack.c.b16 %v141, %v140
    %v153 = vpack.c.b16 %v143, %v142
    %v154 = vpack.c.b16 %v145, %v144
    %v155 = vpack.c.b16 %v147, %v146
    %164 = vmatpush.bf16.msra.mxu0 %v155
    %165 = vmatpush.bf16.msra.mxu0 %v154
    %166 = vmatpush.bf16.msra.mxu0 %v153
    %167 = vmatpush.bf16.msra.mxu0 %v152
    %168 = vmatpush.bf16.msra.mxu0 %v151
    %169 = vmatpush.bf16.msra.mxu0 %v150
    %170 = vmatpush.bf16.msra.mxu0 %v149
    %171 = vmatpush.bf16.msra.mxu0 %v148
    %172 = vmatmul.bf16.gmra.mxu0 %v108
    %v173 = vpop.f32.mrf.mxu0
    %v174 = vadd.f32 %v90, %v173
    %v175 = vpop.f32.mrf.mxu0
    %v176 = vadd.f32 %v90, %v175
    %177 = vmatmul.bf16.gmra.mxu0 %v109
    %v178 = vpop.f32.mrf.mxu0
    %v179 = vadd.f32 %v90, %v178
    %v180 = vpop.f32.mrf.mxu0
    %v181 = vadd.f32 %v90, %v180
    %182 = vmatmul.bf16.gmra.mxu0 %v110
    %v183 = vpop.f32.mrf.mxu0
    %v184 = vadd.f32 %v90, %v183
    %v185 = vpop.f32.mrf.mxu0
    %v186 = vadd.f32 %v90, %v185
    %187 = vmatmul.bf16.gmra.mxu0 %v111
    %v188 = vpop.f32.mrf.mxu0
    %v189 = vadd.f32 %v90, %v188
    %v190 = vpop.f32.mrf.mxu0
    %v191 = vadd.f32 %v90, %v190
    %192 = vdwg.mxu0
    %v193 = vmax.f32 %v174, 0.0
    %v194 = vmax.f32 %v176, 0.0
    %v195 = vmax.f32 %v179, 0.0
    %v196 = vmax.f32 %v181, 0.0
    %v197 = vmax.f32 %v184, 0.0
    %v198 = vmax.f32 %v186, 0.0
    %v199 = vmax.f32 %v189, 0.0
    %v200 = vmax.f32 %v191, 0.0
    %v201 = vpack.c.bf16 %v194, %v193
    %v202 = vpack.c.bf16 %v196, %v195
    %v203 = vpack.c.bf16 %v198, %v197
    %v204 = vpack.c.bf16 %v200, %v199
    %v205 = vld [vmem:[%s3] sm:$0xf]
    %v206 = vld [vmem:[%s3 + $0x4] sm:$0xf]
    %v207 = vld [vmem:[%s3 + $0x8] sm:$0xf]
    %v208 = vld [vmem:[%s3 + $0xc] sm:$0xf]
    %v209 = vld [vmem:[%s3 + $0x10] sm:$0xf]
    %v210 = vld [vmem:[%s3 + $0x14] sm:$0xf]
    %v211 = vld [vmem:[%s3 + $0x18] sm:$0xf]
    %v212 = vld [vmem:[%s3 + $0x1c] sm:$0xf]
    %v213 = vld [vmem:[%s3 + $0x20] sm:$0xf]
    %v214 = vld [vmem:[%s3 + $0x24] sm:$0xf]
    %v215 = vld [vmem:[%s3 + $0x28] sm:$0xf]
    %v216 = vld [vmem:[%s3 + $0x2c] sm:$0xf]
    %v217 = vld [vmem:[%s3 + $0x30] sm:$0xf]
    %v218 = vld [vmem:[%s3 + $0x34] sm:$0xf]
    %v219 = vld [vmem:[%s3 + $0x38] sm:$0xf]
    %v220 = vld [vmem:[%s3 + $0x3c] sm:$0xf]
    %v221 = vld [vmem:[%s4] sm:$0x1]
    %v223 = vperm.slane %v221, 0
    %v241 = vunpack.c.l.b16 %v205
    %v242 = vunpack.c.l.b16 %v206
    %v243 = vunpack.c.l.b16 %v207
    %v244 = vunpack.c.l.b16 %v208
    %v245 = vunpack.c.l.b16 %v209
    %v246 = vunpack.c.l.b16 %v210
    %v247 = vunpack.c.l.b16 %v211
    %v248 = vunpack.c.l.b16 %v212
    %v249 = vunpack.c.l.b16 %v213
    %v250 = vunpack.c.l.b16 %v214
    %v251 = vunpack.c.l.b16 %v215
    %v252 = vunpack.c.l.b16 %v216
    %v253 = vunpack.c.l.b16 %v217
    %v254 = vunpack.c.l.b16 %v218
    %v255 = vunpack.c.l.b16 %v219
    %v256 = vunpack.c.l.b16 %v220
    %v257 = vpack.c.b16 %v242, %v241
    %v258 = vpack.c.b16 %v244, %v243
    %v259 = vpack.c.b16 %v246, %v245
    %v260 = vpack.c.b16 %v248, %v247
    %v261 = vpack.c.b16 %v250, %v249
    %v262 = vpack.c.b16 %v252, %v251
    %v263 = vpack.c.b16 %v254, %v253
    %v264 = vpack.c.b16 %v256, %v255
    %273 = vmatpush.bf16.msra.mxu0 %v264
    %274 = vmatpush.bf16.msra.mxu0 %v263
    %275 = vmatpush.bf16.msra.mxu0 %v262
    %276 = vmatpush.bf16.msra.mxu0 %v261
    %277 = vmatpush.bf16.msra.mxu0 %v260
    %278 = vmatpush.bf16.msra.mxu0 %v259
    %279 = vmatpush.bf16.msra.mxu0 %v258
    %280 = vmatpush.bf16.msra.mxu0 %v257
    %281 = vmatmul.bf16.gmra.mxu0 %v201
    %v282 = vpop.f32.mrf.mxu0
    %v283 = vadd.f32 %v223, %v282
    %v284 = vpop.f32.mrf.mxu0
    %v285 = vadd.f32 %v223, %v284
    %286 = vmatmul.bf16.gmra.mxu0 %v202
    %v287 = vpop.f32.mrf.mxu0
    %v288 = vadd.f32 %v223, %v287
    %v289 = vpop.f32.mrf.mxu0
    %v290 = vadd.f32 %v223, %v289
    %291 = vmatmul.bf16.gmra.mxu0 %v203
    %v292 = vpop.f32.mrf.mxu0
    %v293 = vadd.f32 %v223, %v292
    %v294 = vpop.f32.mrf.mxu0
    %v295 = vadd.f32 %v223, %v294
    %296 = vmatmul.bf16.gmra.mxu0 %v204
    %v297 = vpop.f32.mrf.mxu0
    %v298 = vadd.f32 %v223, %v297
    %v299 = vpop.f32.mrf.mxu0
    %v300 = vadd.f32 %v223, %v299
    %301 = vdwg.mxu0
    %v302 = vmax.f32 %v283, 0.0
    %v303 = vmax.f32 %v285, 0.0
    %v304 = vmax.f32 %v288, 0.0
    %v305 = vmax.f32 %v290, 0.0
    %v306 = vmax.f32 %v293, 0.0
    %v307 = vmax.f32 %v295, 0.0
    %v308 = vmax.f32 %v298, 0.0
    %v309 = vmax.f32 %v300, 0.0
    %v310 = vpack.c.bf16 %v303, %v302
    %v311 = vpack.c.bf16 %v305, %v304
    %v312 = vpack.c.bf16 %v307, %v306
    %v313 = vpack.c.bf16 %v309, %v308
    %v314 = vld [vmem:[#allocation2] sm:$0xf]
    %v315 = vld [vmem:[#allocation2 + $0x4] sm:$0xf]
    %v316 = vld [vmem:[#allocation2 + $0x8] sm:$0xf]
    %v317 = vld [vmem:[#allocation2 + $0xc] sm:$0xf]
    %v318 = vld [vmem:[#allocation2 + $0x10] sm:$0xf]
    %v319 = vld [vmem:[#allocation2 + $0x14] sm:$0xf]
    %v320 = vld [vmem:[#allocation2 + $0x18] sm:$0xf]
    %v321 = vld [vmem:[#allocation2 + $0x1c] sm:$0xf]
    %v322 = vld [vmem:[#allocation2 + $0x20] sm:$0xf]
    %v323 = vld [vmem:[#allocation2 + $0x24] sm:$0xf]
    %v324 = vld [vmem:[#allocation2 + $0x28] sm:$0xf]
    %v325 = vld [vmem:[#allocation2 + $0x2c] sm:$0xf]
    %v326 = vld [vmem:[#allocation2 + $0x30] sm:$0xf]
    %v327 = vld [vmem:[#allocation2 + $0x34] sm:$0xf]
    %v328 = vld [vmem:[#allocation2 + $0x38] sm:$0xf]
    %v329 = vld [vmem:[#allocation2 + $0x3c] sm:$0xf]
    %v330 = vld [vmem:[%s6] sm:$0x1]
    %v332 = vperm.slane %v330, 0
    %v350 = vunpack.c.l.b16 %v314
    %v351 = vunpack.c.l.b16 %v315
    %v352 = vunpack.c.l.b16 %v316
    %v353 = vunpack.c.l.b16 %v317
    %v354 = vunpack.c.l.b16 %v318
    %v355 = vunpack.c.l.b16 %v319
    %v356 = vunpack.c.l.b16 %v320
    %v357 = vunpack.c.l.b16 %v321
    %v358 = vunpack.c.l.b16 %v322
    %v359 = vunpack.c.l.b16 %v323
    %v360 = vunpack.c.l.b16 %v324
    %v361 = vunpack.c.l.b16 %v325
    %v362 = vunpack.c.l.b16 %v326
    %v363 = vunpack.c.l.b16 %v327
    %v364 = vunpack.c.l.b16 %v328
    %v365 = vunpack.c.l.b16 %v329
    %v366 = vpack.c.b16 %v351, %v350
    %v367 = vpack.c.b16 %v353, %v352
    %v368 = vpack.c.b16 %v355, %v354
    %v369 = vpack.c.b16 %v357, %v356
    %v370 = vpack.c.b16 %v359, %v358
    %v371 = vpack.c.b16 %v361, %v360
    %v372 = vpack.c.b16 %v363, %v362
    %v373 = vpack.c.b16 %v365, %v364
    %382 = vmatpush.bf16.msra.mxu0 %v373
    %383 = vmatpush.bf16.msra.mxu0 %v372
    %384 = vmatpush.bf16.msra.mxu0 %v371
    %385 = vmatpush.bf16.msra.mxu0 %v370
    %386 = vmatpush.bf16.msra.mxu0 %v369
    %387 = vmatpush.bf16.msra.mxu0 %v368
    %388 = vmatpush.bf16.msra.mxu0 %v367
    %389 = vmatpush.bf16.msra.mxu0 %v366
    %390 = vmatmul.bf16.gmra.mxu0 %v310
    %v391 = vpop.f32.mrf.mxu0
    %v392 = vadd.f32 %v332, %v391
    %v393 = vpop.f32.mrf.mxu0
    %v394 = vadd.f32 %v332, %v393
    %395 = vmatmul.bf16.gmra.mxu0 %v311
    %v396 = vpop.f32.mrf.mxu0
    %v397 = vadd.f32 %v332, %v396
    %v398 = vpop.f32.mrf.mxu0
    %v399 = vadd.f32 %v332, %v398
    %400 = vmatmul.bf16.gmra.mxu0 %v312
    %v401 = vpop.f32.mrf.mxu0
    %v402 = vadd.f32 %v332, %v401
    %v403 = vpop.f32.mrf.mxu0
    %v404 = vadd.f32 %v332, %v403
    %405 = vmatmul.bf16.gmra.mxu0 %v313
    %v406 = vpop.f32.mrf.mxu0
    %v407 = vadd.f32 %v332, %v406
    %v408 = vpop.f32.mrf.mxu0
    %v409 = vadd.f32 %v332, %v408
    %410 = vdwg.mxu0
    %v411 = vmax.f32 %v392, 0.0
    %v412 = vmax.f32 %v394, 0.0
    %v413 = vmax.f32 %v397, 0.0
    %v414 = vmax.f32 %v399, 0.0
    %v415 = vmax.f32 %v402, 0.0
    %v416 = vmax.f32 %v404, 0.0
    %v417 = vmax.f32 %v407, 0.0
    %v418 = vmax.f32 %v409, 0.0
    %v419 = vpack.c.bf16 %v412, %v411
    %v420 = vpack.c.bf16 %v414, %v413
    %v421 = vpack.c.bf16 %v416, %v415
    %v422 = vpack.c.bf16 %v418, %v417
    %v423 = vld [vmem:[#allocation4] sm:$0xf]
    %v424 = vld [vmem:[#allocation4 + $0x4] sm:$0xf]
    %v425 = vld [vmem:[#allocation4 + $0x8] sm:$0xf]
    %v426 = vld [vmem:[#allocation4 + $0xc] sm:$0xf]
    %v427 = vld [vmem:[#allocation4 + $0x10] sm:$0xf]
    %v428 = vld [vmem:[#allocation4 + $0x14] sm:$0xf]
    %v429 = vld [vmem:[#allocation4 + $0x18] sm:$0xf]
    %v430 = vld [vmem:[#allocation4 + $0x1c] sm:$0xf]
    %v431 = vld [vmem:[#allocation4 + $0x20] sm:$0xf]
    %v432 = vld [vmem:[#allocation4 + $0x24] sm:$0xf]
    %v433 = vld [vmem:[#allocation4 + $0x28] sm:$0xf]
    %v434 = vld [vmem:[#allocation4 + $0x2c] sm:$0xf]
    %v435 = vld [vmem:[#allocation4 + $0x30] sm:$0xf]
    %v436 = vld [vmem:[#allocation4 + $0x34] sm:$0xf]
    %v437 = vld [vmem:[#allocation4 + $0x38] sm:$0xf]
    %v438 = vld [vmem:[#allocation4 + $0x3c] sm:$0xf]
    %v439 = vld [vmem:[%s8] sm:$0x1]
    %v441 = vperm.slane %v439, 0
    %v459 = vunpack.c.l.b16 %v423
    %v460 = vunpack.c.l.b16 %v424
    %v461 = vunpack.c.l.b16 %v425
    %v462 = vunpack.c.l.b16 %v426
    %v463 = vunpack.c.l.b16 %v427
    %v464 = vunpack.c.l.b16 %v428
    %v465 = vunpack.c.l.b16 %v429
    %v466 = vunpack.c.l.b16 %v430
    %v467 = vunpack.c.l.b16 %v431
    %v468 = vunpack.c.l.b16 %v432
    %v469 = vunpack.c.l.b16 %v433
    %v470 = vunpack.c.l.b16 %v434
    %v471 = vunpack.c.l.b16 %v435
    %v472 = vunpack.c.l.b16 %v436
    %v473 = vunpack.c.l.b16 %v437
    %v474 = vunpack.c.l.b16 %v438
    %v475 = vpack.c.b16 %v460, %v459
    %v476 = vpack.c.b16 %v462, %v461
    %v477 = vpack.c.b16 %v464, %v463
    %v478 = vpack.c.b16 %v466, %v465
    %v479 = vpack.c.b16 %v468, %v467
    %v480 = vpack.c.b16 %v470, %v469
    %v481 = vpack.c.b16 %v472, %v471
    %v482 = vpack.c.b16 %v474, %v473
    %491 = vmatpush.bf16.msra.mxu0 %v482
    %492 = vmatpush.bf16.msra.mxu0 %v481
    %493 = vmatpush.bf16.msra.mxu0 %v480
    %494 = vmatpush.bf16.msra.mxu0 %v479
    %495 = vmatpush.bf16.msra.mxu0 %v478
    %496 = vmatpush.bf16.msra.mxu0 %v477
    %497 = vmatpush.bf16.msra.mxu0 %v476
    %498 = vmatpush.bf16.msra.mxu0 %v475
    %499 = vmatmul.bf16.gmra.mxu0 %v419
    %v500 = vpop.f32.mrf.mxu0
    %v501 = vadd.f32 %v441, %v500
    %v502 = vpop.f32.mrf.mxu0
    %v503 = vadd.f32 %v441, %v502
    %504 = vmatmul.bf16.gmra.mxu0 %v420
    %v505 = vpop.f32.mrf.mxu0
    %v506 = vadd.f32 %v441, %v505
    %v507 = vpop.f32.mrf.mxu0
    %v508 = vadd.f32 %v441, %v507
    %509 = vmatmul.bf16.gmra.mxu0 %v421
    %v510 = vpop.f32.mrf.mxu0
    %v511 = vadd.f32 %v441, %v510
    %v512 = vpop.f32.mrf.mxu0
    %v513 = vadd.f32 %v441, %v512
    %514 = vmatmul.bf16.gmra.mxu0 %v422
    %v515 = vpop.f32.mrf.mxu0
    %v516 = vadd.f32 %v441, %v515
    %v517 = vpop.f32.mrf.mxu0
    %v518 = vadd.f32 %v441, %v517
    %519 = vdwg.mxu0
    %520 = vst [vmem:[%s9] sm:$0xff] %v501
    %521 = vst [vmem:[%s9 + $0x8] sm:$0xff] %v503
    %522 = vst [vmem:[%s9 + $0x10] sm:$0xff] %v506
    %523 = vst [vmem:[%s9 + $0x18] sm:$0xff] %v508
    %524 = vst [vmem:[%s9 + $0x20] sm:$0xff] %v511
    %525 = vst [vmem:[%s9 + $0x28] sm:$0xff] %v513
    %526 = vst [vmem:[%s9 + $0x30] sm:$0xff] %v516
    %527 = vst [vmem:[%s9 + $0x38] sm:$0xff] %v518
    // Predicated region
    $region46: #{mlp_forward.1} parent=1 // pred_check
      _
    $region47: #{mlp_forward.1} parent=1 // pred_check_branch
      %529 = sbr.rel (0) target = $region49
    $region48: #{mlp_forward.1} parent=1 // pred_region
      _
    $region49: #{mlp_forward.1} parent=1 // pred_fallthru
      _
    // Predicated region
    $region50: #{mlp_forward.1} parent=1 // pred_check
      _
    $region51: #{mlp_forward.1} parent=1 // pred_check_branch
      %531 = sbr.rel (0) target = $region53
    $region52: #{mlp_forward.1} parent=1 // pred_region
      _
    $region53: #{mlp_forward.1} parent=1 // pred_fallthru
      _
    %532 = vsyncpa [#allocation3], 1
    %533 = vsyncpa [#allocation5], 1

</llo_original>
